<compile_context>
chip_gen: v6e
topology: v6e:2x2x1
jax: 0.10.0
libtpu: 0.0.40
codegen_flags: <defaults>
</compile_context>

<pallas_src>
import jax
import jax.numpy as jnp
import numpy as np
from jax.experimental import pallas as pl
from jax.experimental.pallas import tpu as pltpu


# ----------------------------- Pallas kernel ---------------------------------

def _ste_kernel(x_ref, o_ref):
    # o = 1.0 where x > 0 else 0.0   (single VPU compare + select, store f32)
    o_ref[...] = (x_ref[...] > 0).astype(o_ref.dtype)


# ------------------------------- wrapper --------------------------------------

_LANE = 128   # lane width: last dim of every block is exactly 128


def _chip_config():
    """Returns (max_block_rows, vmem_limit_bytes_or_None) per TPU generation."""
    kind = ""
    try:
        kind = jax.devices()[0].device_kind.lower()
    except Exception:
        pass
    if ("v5 lite" in kind) or ("v5e" in kind) or ("v5litepod" in kind):
        # v5e: 16 MiB default scoped VMEM -> 2 MiB f32 blocks (8 MiB dbl-buffered).
        return 4096, None
    if "v7" in kind:
        # v7x: 3.2 TB/s HBM but only 64 MiB physical VMEM/TC -> 8 MiB blocks,
        # raise the scoped limit so in+out double-buffered (32 MiB) fits cleanly.
        return 16384, 48 * 1024 * 1024
    # v6e / v5p / unknown: 4 MiB f32 blocks fit the 32 MiB default scoped VMEM.
    return 8192, None


def ste_forward(x):
    """Forward of StraightThroughEstimator: (x > 0).float(). Any shape/dtype."""
    orig_shape = x.shape
    n = int(np.prod(orig_shape)) if orig_shape else 1

    cap, vmem_limit = _chip_config()

    # Lane-dense view: flatten to (rows, 128). Pad only when numel is not a
    # multiple of 128 (small flat pad); never pad to a multiple of block size.
    padded_n = pl.cdiv(n, _LANE) * _LANE
    rows = padded_n // _LANE

    xf = jnp.ravel(x)
    if padded_n != n:
        xf = jnp.pad(xf, (0, padded_n - n))
    x2 = xf.reshape(rows, _LANE)

    if rows >= cap:
        block_rows = cap        # multiple of 32 -> legal/efficient for packed dtypes
    else:
        block_rows = rows       # block == full array dims: single grid step
    grid = (pl.cdiv(rows, block_rows),)   # partial final block masked by Pallas

    cp_kwargs = dict(dimension_semantics=("parallel",))
    if vmem_limit is not None:
        cp_kwargs["vmem_limit_bytes"] = vmem_limit

    out = pl.pallas_call(
        _ste_kernel,
        out_shape=jax.ShapeDtypeStruct((rows, _LANE), jnp.float32),
        grid=grid,
        in_specs=[pl.BlockSpec((block_rows, _LANE), lambda i: (i, 0))],
        out_specs=pl.BlockSpec((block_rows, _LANE), lambda i: (i, 0)),
        compiler_params=pltpu.CompilerParams(**cp_kwargs),
    )(x2)

    if padded_n != n:
        return out.reshape(-1)[:n].reshape(orig_shape)
    return out.reshape(orig_shape)


# ----------------------------- pure-JAX reference ------------------------------

def ste_forward_ref(x):
    return (x > 0).astype(jnp.float32)


# ----------------------------------- main --------------------------------------

if __name__ == "__main__":
    key = jax.random.PRNGKey(0)
    x = jax.random.normal(key, (2, 4, 16, 16), jnp.float32)

    out = jax.block_until_ready(jax.jit(ste_forward)(x))
    assert out.shape == x.shape, out.shape
    assert out.dtype == jnp.float32, out.dtype
    np.testing.assert_allclose(np.asarray(out),
                               np.asarray(ste_forward_ref(x)),
                               rtol=0, atol=0)

    # Shape that is NOT a multiple of 128 elements (exercises the small pad path).
    x_odd = jax.random.normal(jax.random.PRNGKey(1), (3, 5, 7), jnp.float32)
    out_odd = jax.block_until_ready(jax.jit(ste_forward)(x_odd))
    np.testing.assert_allclose(np.asarray(out_odd),
                               np.asarray(ste_forward_ref(x_odd)),
                               rtol=0, atol=0)

    # bf16 input (packed dtype) — output stays float32 like PyTorch `.float()`.
    x_bf16 = jax.random.normal(jax.random.PRNGKey(2), (4, 8, 32), jnp.bfloat16)
    out_bf = jax.block_until_ready(jax.jit(ste_forward)(x_bf16))
    assert out_bf.dtype == jnp.float32
    np.testing.assert_allclose(np.asarray(out_bf),
                               np.asarray(ste_forward_ref(x_bf16)),
                               rtol=0, atol=0)

    print("KERNEL_OK")
</pallas_src>

<mosaic_0001>
module attributes {stable_mosaic.version = 11 : i64} {
  func.func @_ste_kernel(%arg0: i32, %arg1: memref<16x128xf32, #tpu.memory_space<vmem>>, %arg2: memref<16x128xf32, #tpu.memory_space<vmem>>) attributes {dimension_semantics = [#tpu.dimension_semantics<parallel>], iteration_bounds = array<i64: 1>, scalar_prefetch = 0 : i64, scratch_operands = 0 : i64, tpu.core_type = #tpu.core_type<tc>, window_params = [{transform_indices = @transform_0, window_bounds = array<i64: 16, 128>}, {transform_indices = @transform_1, window_bounds = array<i64: 16, 128>}]} {
    %c0 = arith.constant 0 : index
    %c0_0 = arith.constant 0 : index
    %0 = vector.load %arg1[%c0, %c0_0] : memref<16x128xf32, #tpu.memory_space<vmem>>, vector<16x128xf32>
    %cst = arith.constant 0.000000e+00 : f32
    %1 = vector.broadcast %cst : f32 to vector<16x128xf32>
    %2 = arith.cmpf ogt, %0, %1 : vector<16x128xf32>
    %3 = arith.extui %2 : vector<16x128xi1> to vector<16x128xi32>
    %4 = arith.sitofp %3 : vector<16x128xi32> to vector<16x128xf32>
    %c0_1 = arith.constant 0 : index
    %c0_2 = arith.constant 0 : index
    %5 = vector.load %arg2[%c0_1, %c0_2] : memref<16x128xf32, #tpu.memory_space<vmem>>, vector<16x128xf32>
    tpu.vector_store %arg2[%c0_1, %c0_2], %4 {strides = array<i32>} : memref<16x128xf32, #tpu.memory_space<vmem>>, vector<16x128xf32>,
    return
  }
  func.func @transform_0(%arg0: i32) -> (i32, i32) {
    %c0_i32 = arith.constant 0 : i32
    %c0_i32_0 = arith.constant 0 : i32
    return %arg0, %c0_i32 : i32, i32
  }
  func.func @transform_1(%arg0: i32) -> (i32, i32) {
    %c0_i32 = arith.constant 0 : i32
    %c0_i32_0 = arith.constant 0 : i32
    return %arg0, %c0_i32 : i32, i32
  }
}

</mosaic_0001>

<llo_original>
// kernel: ste_forward.1
$region0: #{ste_forward.1}
  #allocation0 [shape = 'u32[]', space=smem, size = 0x4, offset = 0x4, fixed_abs, tag = 'smem constant byte address 0x4 - core index']
  #allocation1 [shape = 'u32[144,128]{1,0:T(1,128)}', space=vmem, size = 0x12000, scoped, tag = 'internal scratch']
  %s0 = inlined_call_operand.vmem [shape: f32[16,128], index: 0, kind: input, shape index: {}]
  %s1 = inlined_call_operand.vmem [shape: f32[16,128], index: 1, kind: output, shape index: {}]
  %s2 = sld [smem:[#allocation0]]
  $region14: #{ste_forward.1} parent=0
    _
  %s4 = ssub.s32 1, %s2
  %s5 = scalar_select 0, %s4, %s2
  // Predicated region
  $region2: #{ste_forward.1} parent=0 // pred_check
    _
  $region3: #{ste_forward.1} parent=0 // pred_check_branch
    %7 = sbr.rel (0) target = $region5
  $region4: #{ste_forward.1} parent=0 // pred_region
    _
  $region5: #{ste_forward.1} parent=0 // pred_fallthru
    _
  %v8 = vld [vmem:[%s0] sm:$0xff]
  %v9 = vld [vmem:[%s0 + $0x8] sm:$0xff]
  %vm10 = vcmp.gt.f32.partialorder %v8, 0.0
  %vm11 = vcmp.gt.f32.partialorder %v9, 0.0
  %v12 = vsel %vm10, 1, 0
  %v13 = vsel %vm11, 1, 0
  %v14 = vcvt.s32.f32 %v12
  %v15 = vcvt.s32.f32 %v13
  %16 = vst [vmem:[%s1] sm:$0xff] %v14
  %17 = vst [vmem:[%s1 + $0x8] sm:$0xff] %v15
  // Predicated region
  $region6: #{ste_forward.1} parent=0 // pred_check
    _
  $region7: #{ste_forward.1} parent=0 // pred_check_branch
    %19 = sbr.rel (0) target = $region9
  $region8: #{ste_forward.1} parent=0 // pred_region
    _
  $region9: #{ste_forward.1} parent=0 // pred_fallthru
    _
  // Predicated region
  $region10: #{ste_forward.1} parent=0 // pred_check
    _
  $region11: #{ste_forward.1} parent=0 // pred_check_branch
    %21 = sbr.rel (0) target = $region13
  $region12: #{ste_forward.1} parent=0 // pred_region
    _
  $region13: #{ste_forward.1} parent=0 // pred_fallthru
    _

</llo_original>
